<compile_context>
chip_gen: v7x
topology: tpu7x:2x2x1
jax: 0.10.0
libtpu: 0.0.40
codegen_flags: <defaults>
</compile_context>

<pallas_src>
import functools

import jax
import jax.numpy as jnp
from jax.experimental import pallas as pl
from jax.experimental.pallas import tpu as pltpu


def _round_up(x, n):
    return -(-x // n) * n


def _kl_div_loss_kernel(lp_ref, olp_ref, out_ref, acc_ref, *, coef, target,
                        C, tk, nk):
    lp = lp_ref[...].astype(jnp.float32)       # (tm, tk)
    olp = olp_ref[...].astype(jnp.float32)     # (tm, tk)
    y = jnp.exp(lp) * (lp - olp)               # KL integrand on VPU/EUP

    if nk > 1 and C % tk != 0:
        # Ragged last class block: zero the padded (garbage) columns so they
        # never contaminate the accumulated row sums.
        valid = C - pl.program_id(1) * tk
        col = jax.lax.broadcasted_iota(jnp.int32, y.shape, 1)
        y = jnp.where(col < valid, y, 0.0)

    # Row-sum as ones(1,tk) @ y(tm,tk)^T on the MXU: result is lane-major
    # (1, tm) -> lane-dense output stores.  bf16 hi/lo split keeps ~f32
    # accuracy with two single-pass (DEFAULT precision) matmuls.
    hi = y.astype(jnp.bfloat16)
    lo = (y - hi.astype(jnp.float32)).astype(jnp.bfloat16)
    ones = jnp.ones((1, y.shape[-1]), jnp.bfloat16)
    dn = (((1,), (1,)), ((), ()))
    partial = (
        jax.lax.dot_general(ones, hi, dn, preferred_element_type=jnp.float32)
        + jax.lax.dot_general(ones, lo, dn, preferred_element_type=jnp.float32)
    )                                           # (1, tm) f32

    if nk == 1:
        loss = coef * (partial - target) ** 2
        out_ref[...] = loss[None].astype(out_ref.dtype)      # (1, 1, tm)
    else:
        k = pl.program_id(1)

        @pl.when(k == 0)
        def _init():
            acc_ref[...] = jnp.zeros_like(acc_ref)

        acc_ref[...] += partial

        @pl.when(k == nk - 1)
        def _finalize():
            loss = coef * (acc_ref[...] - target) ** 2
            out_ref[...] = loss[None].astype(out_ref.dtype)  # (1, 1, tm)


def _vmem_capacity_bytes():
    try:
        return int(pltpu.get_tpu_info().vmem_capacity_bytes)
    except Exception:
        return 64 << 20              # conservative (v7x-sized) fallback


def _choose_tiles(M, C, itemsize, vmem_cap_bytes, max_rows=32768):
    """Pick (tm, tk) row/class tile sizes from the per-generation VMEM budget."""
    itemsize = int(itemsize)
    cpad = _round_up(C, 128)         # lane-padded footprint of the class axis
    sub = max(8, 32 // itemsize)     # sublane packing of the input dtype
    # Per-element VMEM cost of one live block position:
    #   2 inputs x 2 pipeline buffers (input dtype) + ~3 f32 temporaries
    #   (lp, olp, y) + bf16 hi/lo dot operands.
    bpe = 4 * itemsize + 3 * 4 + 2 * 2
    budget = min(int(vmem_cap_bytes * 0.55), 48 << 20)

    tk = C
    tm = budget // (cpad * bpe)
    if tm < 256 and cpad > 128:
        # Vocab-scale class axis: split it onto a trailing "arbitrary" grid
        # axis (VMEM accumulator) so the row tile stays lane-dense.
        tm_goal = min(512, _round_up(max(M, 1), sub))
        tk = max(128, (budget // (max(tm_goal, sub) * bpe)) // 128 * 128)
        if tk >= C:
            tk = C
        tm = budget // (max(tk, 128) * bpe)

    tm = min(tm, max_rows)
    if M > 256:
        # Keep >= 2 row tiles so both v7x TensorCores get work.
        tm = min(tm, _round_up(-(-M // 2), 128))
    tm = (tm // 128) * 128 if tm >= 128 else (tm // sub) * sub
    tm = max(tm, sub)
    if tm > M:
        tm = M if M < sub else _round_up(M, sub)
    return tm, tk


def kl_divergence_loss(log_probs, old_log_probs, *, target, coef=1.0,
                       max_rows=32768):
    """Pallas TPU implementation of KLDivergenceLoss.forward.

    Returns coef * (sum(exp(lp) * (lp - olp), -1) - target)**2 with the shape
    of `log_probs` minus its last dim.
    """
    assert log_probs.shape == old_log_probs.shape
    *lead, C = log_probs.shape
    lead = tuple(lead)

    lp2 = log_probs.reshape(-1, C)
    olp2 = old_log_probs.reshape(-1, C)
    M = lp2.shape[0]

    itemsize = int(jnp.dtype(log_probs.dtype).itemsize)
    vmem_cap = _vmem_capacity_bytes()
    tm, tk = _choose_tiles(M, C, itemsize, vmem_cap, max_rows=max_rows)
    nm = -(-M // tm)                 # cdiv; ragged last row block is OK
    nk = -(-C // tk)                 # cdiv; ragged last class block is masked

    # NOTE: target/coef are compile-time constants (sweeping them recompiles);
    # move them to scalar-prefetch SMEM args if they must vary per call.
    kernel = functools.partial(
        _kl_div_loss_kernel, coef=float(coef), target=float(target),
        C=C, tk=tk, nk=nk)

    cost = pl.CostEstimate(
        flops=8 * M * C,
        transcendentals=M * C,
        bytes_accessed=2 * M * C * itemsize + M * 4,
    )

    out = pl.pallas_call(
        kernel,
        out_shape=jax.ShapeDtypeStruct((nm, 1, tm), jnp.float32),
        grid_spec=pltpu.PrefetchScalarGridSpec(
            num_scalar_prefetch=0,
            grid=(nm, nk),                       # reduction axis last
            in_specs=[
                pl.BlockSpec((tm, tk), lambda i, k: (i, k)),
                pl.BlockSpec((tm, tk), lambda i, k: (i, k)),
            ],
            # Lane-dense output slab; same block across k -> resident output.
            out_specs=pl.BlockSpec((1, 1, tm), lambda i, k: (i, 0, 0)),
            scratch_shapes=[pltpu.VMEM((1, tm), jnp.float32)],
        ),
        compiler_params=pltpu.CompilerParams(
            dimension_semantics=("parallel", "arbitrary"),
            vmem_limit_bytes=min(vmem_cap * 3 // 4, 64 << 20),
        ),
        cost_estimate=cost,
    )(lp2, olp2)

    out = out.reshape(nm * tm)[:M]
    return out.reshape(lead)


def _reference(log_probs, old_log_probs, target, coef):
    kl = jnp.sum(jnp.exp(log_probs) * (log_probs - old_log_probs), axis=-1)
    return coef * (kl - target) ** 2


if __name__ == "__main__":
    # Module "params" (set deterministically in-script).
    TARGET = 0.01
    COEF = 1.0

    key = jax.random.PRNGKey(0)
    k1, k2, k3, k4 = jax.random.split(key, 4)

    # Small shapes consistent with the module: batch=2, seq=8, classes=32.
    B, S, C = 2, 8, 32
    log_probs = jax.nn.log_softmax(
        jax.random.normal(k1, (B, S, C), dtype=jnp.float32), axis=-1)
    old_log_probs = jax.nn.log_softmax(
        jax.random.normal(k2, (B, S, C), dtype=jnp.float32), axis=-1)

    loss = kl_divergence_loss(log_probs, old_log_probs, target=TARGET, coef=COEF)
    loss = jax.block_until_ready(loss)
    ref = _reference(log_probs, old_log_probs, TARGET, COEF)
    assert loss.shape == (B, S), loss.shape
    assert jnp.allclose(loss, ref, atol=1e-4, rtol=1e-4), (loss, ref)

    # Vocab-scale class axis: exercises the split-C accumulator path plus the
    # ragged-row slicing and ragged-class masking (300 % tm != 0, 8000 % tk != 0).
    M2, C2 = 300, 8000
    lp_big = jax.nn.log_softmax(
        jax.random.normal(k3, (M2, C2), dtype=jnp.float32), axis=-1)
    olp_big = jax.nn.log_softmax(
        jax.random.normal(k4, (M2, C2), dtype=jnp.float32), axis=-1)
    loss_big = kl_divergence_loss(lp_big, olp_big, target=TARGET, coef=COEF)
    loss_big = jax.block_until_ready(loss_big)
    ref_big = _reference(lp_big, olp_big, TARGET, COEF)
    assert loss_big.shape == (M2,), loss_big.shape
    assert jnp.allclose(loss_big, ref_big, atol=1e-4, rtol=1e-3), (
        float(jnp.max(jnp.abs(loss_big - ref_big))))

    print("KERNEL_OK")
</pallas_src>

<mosaic_0001>
module attributes {stable_mosaic.version = 11 : i64} {
  func.func @_kl_div_loss_kernel(%arg0: i32, %arg1: i32, %arg2: memref<16x32xf32, #tpu.memory_space<vmem>>, %arg3: memref<16x32xf32, #tpu.memory_space<vmem>>, %arg4: memref<1x1x16xf32, #tpu.memory_space<vmem>>, %arg5: memref<1x16xf32, #tpu.memory_space<vmem>>) attributes {dimension_semantics = [#tpu.dimension_semantics<parallel>, #tpu.dimension_semantics<arbitrary>], iteration_bounds = array<i64: 1, 1>, scalar_prefetch = 0 : i64, scratch_operands = 1 : i64, tpu.core_type = #tpu.core_type<tc>, window_params = [{transform_indices = @transform_0, window_bounds = array<i64: 16, 32>}, {transform_indices = @transform_1, window_bounds = array<i64: 16, 32>}, {transform_indices = @transform_2, window_bounds = array<i64: 1, 1, 16>}]} {
    %c0 = arith.constant 0 : index
    %c0_0 = arith.constant 0 : index
    %0 = vector.load %arg2[%c0, %c0_0] : memref<16x32xf32, #tpu.memory_space<vmem>>, vector<16x32xf32>
    %c0_1 = arith.constant 0 : index
    %c0_2 = arith.constant 0 : index
    %1 = vector.load %arg3[%c0_1, %c0_2] : memref<16x32xf32, #tpu.memory_space<vmem>>, vector<16x32xf32>
    %2 = math.exp %0 : vector<16x32xf32>
    %3 = arith.subf %0, %1 : vector<16x32xf32>
    %4 = arith.mulf %2, %3 : vector<16x32xf32>
    %5 = arith.truncf %4 : vector<16x32xf32> to vector<16x32xbf16>
    %6 = arith.extf %5 : vector<16x32xbf16> to vector<16x32xf32>
    %7 = arith.subf %4, %6 : vector<16x32xf32>
    %8 = arith.truncf %7 : vector<16x32xf32> to vector<16x32xbf16>
    %cst = arith.constant 1.000000e+00 : bf16
    %9 = vector.broadcast %cst : bf16 to vector<1x32xbf16>
    %cst_3 = arith.constant dense<0.000000e+00> : vector<1x16xf32>
    %10 = tpu.matmul %9, %5, %cst_3 {dimension_numbers = #tpu.dot_dimension_numbers<[1], [1], [0], [0], [0, 0, 1, 0], [], []>} : vector<1x32xbf16>, vector<16x32xbf16>, vector<1x16xf32> -> vector<1x16xf32>
    %cst_4 = arith.constant dense<0.000000e+00> : vector<1x16xf32>
    %11 = tpu.matmul %9, %8, %cst_4 {dimension_numbers = #tpu.dot_dimension_numbers<[1], [1], [0], [0], [0, 0, 1, 0], [], []>} : vector<1x32xbf16>, vector<16x32xbf16>, vector<1x16xf32> -> vector<1x16xf32>
    %12 = arith.addf %10, %11 : vector<1x16xf32>
    %cst_5 = arith.constant 0.00999999977 : f32
    %13 = vector.broadcast %cst_5 : f32 to vector<1x16xf32>
    %14 = arith.subf %12, %13 : vector<1x16xf32>
    %15 = arith.mulf %14, %14 : vector<1x16xf32>
    %cst_6 = arith.constant 1.000000e+00 : f32
    %16 = vector.broadcast %cst_6 : f32 to vector<1x16xf32>
    %17 = arith.mulf %16, %15 : vector<1x16xf32>
    %18 = vector.shape_cast %17 : vector<1x16xf32> to vector<1x1x16xf32>
    %c0_7 = arith.constant 0 : index
    %c0_8 = arith.constant 0 : index
    %c0_9 = arith.constant 0 : index
    %19 = vector.load %arg4[%c0_7, %c0_8, %c0_9] : memref<1x1x16xf32, #tpu.memory_space<vmem>>, vector<1x1x16xf32>
    tpu.vector_store %arg4[%c0_7, %c0_8, %c0_9], %18 {strides = array<i32>} : memref<1x1x16xf32, #tpu.memory_space<vmem>>, vector<1x1x16xf32>,
    return
  }
  func.func @transform_0(%arg0: i32, %arg1: i32) -> (i32, i32) {
    %c0_i32 = arith.constant 0 : i32
    return %arg0, %arg1 : i32, i32
  }
  func.func @transform_1(%arg0: i32, %arg1: i32) -> (i32, i32) {
    %c0_i32 = arith.constant 0 : i32
    return %arg0, %arg1 : i32, i32
  }
  func.func @transform_2(%arg0: i32, %arg1: i32) -> (i32, i32, i32) {
    %c0_i32 = arith.constant 0 : i32
    %c0_i32_0 = arith.constant 0 : i32
    %c0_i32_1 = arith.constant 0 : i32
    return %arg0, %c0_i32, %c0_i32_0 : i32, i32, i32
  }
}

</mosaic_0001>

<llo_original>
// kernel: tpu_custom_call.1
$region0: #{tpu_custom_call.1}
  #allocation0 [shape = 'u32[]', space=smem, size = 0x4, offset = 0x4, fixed_abs, tag = 'smem constant byte address 0x4 - core index']
  #allocation1 [shape = 'u32[144,128]{1,0:T(1,128)}', space=vmem, size = 0x12000, scoped, tag = 'internal scratch']
  #allocation2 [shape = 'f32[1,16]{1,0:T(1,128)}', space=vmem, size = 0x200, scoped, tag = 'scratch operand']
  %s0 = inlined_call_operand.hbm [shape: f32[16,32], index: 0, kind: input, shape index: {}]
  %s1 = inlined_call_operand.hbm [shape: f32[16,32], index: 1, kind: input, shape index: {}]
  %s2 = inlined_call_operand.hbm [shape: f32[1,1,16], index: 2, kind: output, shape index: {}]
  %s3 = sld [smem:[#allocation0]]
  $region26: #{tpu_custom_call.1} parent=0
    _
  %s5 = ssub.s32 1, %s3
  %s6 = scalar_select 0, %s5, %s3
  $region1: #{tpu_custom_call.1} parent=0
    #allocation3 [shape = 'u8[8192]{0}', space=vmem, size = 0x2000, scoped, tag = 'input window, operand 0, single buffered']
    #allocation4 [shape = 's32[1]{0}', space=sflag, size = 0x4, scoped, tag = 'scoped memory for tpu_custom_call.1']
    #allocation5 [shape = 's32[1]{0}', space=sflag, size = 0x4, scoped, tag = 'scoped memory for tpu_custom_call.1']
    #allocation6 [shape = 'u8[8192]{0}', space=vmem, size = 0x2000, scoped, tag = 'input window, operand 1, single buffered']
    #allocation7 [shape = 's32[1]{0}', space=sflag, size = 0x4, scoped, tag = 'scoped memory for tpu_custom_call.1']
    #allocation8 [shape = 'u8[512]{0}', space=vmem, size = 0x400, scoped, tag = 'output window, operand 0, single buffered']
    %7 = vsyncpa [#allocation4], 0
    %8 = vsyncpa [#allocation7], 0
    %9 = vsyncpa [#allocation5], 0
    // Predicated region
    $region2: #{tpu_custom_call.1} parent=1 // pred_check
      _
    $region3: #{tpu_custom_call.1} parent=1 // pred_check_branch
      %11 = sbr.rel (0) target = $region5
    $region4: #{tpu_custom_call.1} parent=1 // pred_region
      %s13 = ssub.s32 256, 256
      %14 = vsyncadd [#allocation4], %s13
      %s15 = sshll.u32 [#allocation3], 4
      %s16 = int_to_ptr.vmem [resolvable:$true] %s15
      %21 = dma.hbm_to_vmem [thread:$0]  %s0, 256, %s16, [#allocation4], 128, 128, 8
    $region5: #{tpu_custom_call.1} parent=1 // pred_fallthru
      _
    // Predicated region
    $region6: #{tpu_custom_call.1} parent=1 // pred_check
      _
    $region7: #{tpu_custom_call.1} parent=1 // pred_check_branch
      %23 = sbr.rel (0) target = $region9
    $region8: #{tpu_custom_call.1} parent=1 // pred_region
      %s25 = ssub.s32 256, 256
      %26 = vsyncadd [#allocation7], %s25
      %s27 = sshll.u32 [#allocation6], 4
      %s28 = int_to_ptr.vmem [resolvable:$true] %s27
      %33 = dma.hbm_to_vmem [thread:$0]  %s1, 256, %s28, [#allocation7], 128, 128, 8
    $region9: #{tpu_custom_call.1} parent=1 // pred_fallthru
      _
    // Predicated region
    $region10: #{tpu_custom_call.1} parent=1 // pred_check
      _
    $region11: #{tpu_custom_call.1} parent=1 // pred_check_branch
      %35 = sbr.rel (0) target = $region13
    $region12: #{tpu_custom_call.1} parent=1 // pred_region
      %36 = dma.done [#allocation4], 256
    $region13: #{tpu_custom_call.1} parent=1 // pred_fallthru
      _
    // Predicated region
    $region14: #{tpu_custom_call.1} parent=1 // pred_check
      _
    $region15: #{tpu_custom_call.1} parent=1 // pred_check_branch
      %38 = sbr.rel (0) target = $region17
    $region16: #{tpu_custom_call.1} parent=1 // pred_region
      %39 = dma.done [#allocation7], 256
    $region17: #{tpu_custom_call.1} parent=1 // pred_fallthru
      _
    %v42 = vld [vmem:[#allocation3] sm:$0xff]
    %v43 = vld [vmem:[#allocation3 + $0x8] sm:$0xff]
    %v44 = vld [vmem:[#allocation6] sm:$0xff]
    %v45 = vld [vmem:[#allocation6 + $0x8] sm:$0xff]
    %v46 = vmul.f32 %v42, 1.442695
    %v47 = vpow.pop %v46
    %v48 = vmul.f32 %v43, 1.442695
    %v49 = vpow.pop %v48
    %v50 = vsub.f32 %v42, %v44
    %v51 = vsub.f32 %v43, %v45
    %v52 = vmul.f32 %v47, %v50
    %v53 = vmul.f32 %v49, %v51
    %v54 = vpack.c.bf16 %v53, %v52
    %v55 = vunpack.c.l.bf16 %v54
    %v56 = vunpack.c.h.bf16 %v54
    %v57 = vsub.f32 %v52, %v55
    %v58 = vsub.f32 %v53, %v56
    %v59 = vpack.c.bf16 %v58, %v57
    %vm60 = vcmask 261120
    %v62 = vsel %vm60, 1065369472, 0
    %v65 = vsel %vm60, %v59, 0
    %67 = vmatprep.subr.bf16.mxu0 0
    %68 = vmatpush1.bf16.xpose.msra.mxu0 %v65
    %69 = vmatprep.subr.bf16.mxu0 0
    %70 = vmatpush1.bf16.xpose.msra.mxu0 0
    %71 = vmatprep.subr.bf16.mxu0 0
    %72 = vmatpush1.bf16.xpose.msra.mxu0 0
    %73 = vmatprep.subr.bf16.mxu0 0
    %74 = vmatpush1.bf16.xpose.msra.mxu0 0
    %75 = vmatprep.subr.bf16.mxu0 0
    %76 = vmatpush1.bf16.xpose.msra.mxu0 0
    %77 = vmatprep.subr.bf16.mxu0 0
    %78 = vmatpush1.bf16.xpose.msra.mxu0 0
    %79 = vmatprep.subr.bf16.mxu0 0
    %80 = vmatpush1.bf16.xpose.msra.mxu0 0
    %81 = vmatprep.subr.bf16.mxu0 0
    %82 = vmatpush1.bf16.xpose.msra.mxu0 0
    %83 = vmatprep.subr.bf16.mxu0 0
    %84 = vmatpush1.bf16.xpose.msra.mxu0 0
    %85 = vmatprep.subr.bf16.mxu0 0
    %86 = vmatpush1.bf16.xpose.msra.mxu0 0
    %87 = vmatprep.subr.bf16.mxu0 0
    %88 = vmatpush1.bf16.xpose.msra.mxu0 0
    %89 = vmatprep.subr.bf16.mxu0 0
    %90 = vmatpush1.bf16.xpose.msra.mxu0 0
    %91 = vmatprep.subr.bf16.mxu0 0
    %92 = vmatpush1.bf16.xpose.msra.mxu0 0
    %93 = vmatprep.subr.bf16.mxu0 0
    %94 = vmatpush1.bf16.xpose.msra.mxu0 0
    %95 = vmatprep.subr.bf16.mxu0 0
    %96 = vmatpush1.bf16.xpose.msra.mxu0 0
    %97 = vmatprep.subr.bf16.mxu0 0
    %98 = vmatpush1.bf16.xpose.msra.mxu0 0
    %99 = vmatprep.mubr.bf16.mxu0 0
    %100 = vmatmul.mubr.bf16.gmra.mrb[0].mxu0 %v62
    %v101 = vpop.f32.mrb[0].mxu0
    %v102 = vadd.f32 0.0, %v101
    %v103 = vpop.f32.mrb[0].mxu0
    %v104 = vpop.f32.mrb[0].mxu0
    %v105 = vpop.f32.mrb[0].mxu0
    %106 = vdwg.mxu0
    %v108 = vsel %vm60, %v54, 0
    %110 = vmatprep.subr.bf16.mxu0 0
    %111 = vmatpush1.bf16.xpose.msra.mxu0 %v108
    %112 = vmatprep.subr.bf16.mxu0 0
    %113 = vmatpush1.bf16.xpose.msra.mxu0 0
    %114 = vmatprep.subr.bf16.mxu0 0
    %115 = vmatpush1.bf16.xpose.msra.mxu0 0
    %116 = vmatprep.subr.bf16.mxu0 0
    %117 = vmatpush1.bf16.xpose.msra.mxu0 0
    %118 = vmatprep.subr.bf16.mxu0 0
    %119 = vmatpush1.bf16.xpose.msra.mxu0 0
    %120 = vmatprep.subr.bf16.mxu0 0
    %121 = vmatpush1.bf16.xpose.msra.mxu0 0
    %122 = vmatprep.subr.bf16.mxu0 0
    %123 = vmatpush1.bf16.xpose.msra.mxu0 0
    %124 = vmatprep.subr.bf16.mxu0 0
    %125 = vmatpush1.bf16.xpose.msra.mxu0 0
    %126 = vmatprep.subr.bf16.mxu0 0
    %127 = vmatpush1.bf16.xpose.msra.mxu0 0
    %128 = vmatprep.subr.bf16.mxu0 0
    %129 = vmatpush1.bf16.xpose.msra.mxu0 0
    %130 = vmatprep.subr.bf16.mxu0 0
    %131 = vmatpush1.bf16.xpose.msra.mxu0 0
    %132 = vmatprep.subr.bf16.mxu0 0
    %133 = vmatpush1.bf16.xpose.msra.mxu0 0
    %134 = vmatprep.subr.bf16.mxu0 0
    %135 = vmatpush1.bf16.xpose.msra.mxu0 0
    %136 = vmatprep.subr.bf16.mxu0 0
    %137 = vmatpush1.bf16.xpose.msra.mxu0 0
    %138 = vmatprep.subr.bf16.mxu0 0
    %139 = vmatpush1.bf16.xpose.msra.mxu0 0
    %140 = vmatprep.subr.bf16.mxu0 0
    %141 = vmatpush1.bf16.xpose.msra.mxu0 0
    %142 = vmatprep.mubr.bf16.mxu0 0
    %143 = vmatmul.mubr.bf16.gmra.mrb[0].mxu0 %v62
    %v144 = vpop.f32.mrb[0].mxu0
    %v145 = vadd.f32 %v102, %v144
    %v146 = vpop.f32.mrb[0].mxu0
    %v147 = vpop.f32.mrb[0].mxu0
    %v148 = vpop.f32.mrb[0].mxu0
    %149 = vdwg.mxu0
    %v150 = vsub.f32 %v145, 0.01
    %v151 = vmul.f32 %v150, %v150
    %vm152 = vcmask 122880
    %153 = vst.msk [vmem:[#allocation8] sm:$0x1] %vm152, %v151
    // Predicated region
    $region18: #{tpu_custom_call.1} parent=1 // pred_check
      _
    $region19: #{tpu_custom_call.1} parent=1 // pred_check_branch
      %155 = sbr.rel (0) target = $region21
    $region20: #{tpu_custom_call.1} parent=1 // pred_region
      %s157 = ssub.s32 16, 16
      %158 = vsyncadd [#allocation5], %s157
      %s160 = sshll.u32 [#allocation8], 4
      %s161 = int_to_ptr.vmem [resolvable:$true] %s160
      %163 = dma.vmem_to_hbm [thread:$0]  %s161, 16, %s2, [#allocation5]
    $region21: #{tpu_custom_call.1} parent=1 // pred_fallthru
      _
    // Predicated region
    $region22: #{tpu_custom_call.1} parent=1 // pred_check
      _
    $region23: #{tpu_custom_call.1} parent=1 // pred_check_branch
      %165 = sbr.rel (0) target = $region25
    $region24: #{tpu_custom_call.1} parent=1 // pred_region
      %166 = dma.done [#allocation5], 16
    $region25: #{tpu_custom_call.1} parent=1 // pred_fallthru
      _
    %167 = vsyncpa [#allocation4], 1
    %168 = vsyncpa [#allocation7], 1
    %169 = vsyncpa [#allocation5], 1

</llo_original>
